<compile_context>
chip_gen: v6e
topology: v6e:2x2x1
jax: 0.10.0
libtpu: 0.0.40
codegen_flags: <defaults>
</compile_context>

<pallas_src>
import jax
import jax.numpy as jnp
import numpy as np
from jax.experimental import pallas as pl
from jax.experimental.pallas import tpu as pltpu


DEFAULT_TM = 512
DEFAULT_TN = 1024
DEFAULT_TK = 1024


# ---------------------------------------------------------------------------
# Geometry setup (mirrors LogPolar.__init__ / compute_map / forward glue).
# ---------------------------------------------------------------------------
def compute_map(input_shape, output_shape, position="circumscribed",
                log_polar_distance=700.0):
    H, W = input_shape
    oh, ow = output_shape
    shp = jnp.array([float(H), float(W)], dtype=jnp.float32)
    if position == "circumscribed":
        max_r = jnp.log(jnp.linalg.norm(shp) / 2.0 * log_polar_distance)
    else:
        max_r = jnp.log(jnp.max(shp) / 2.0 * log_polar_distance)
    theta = jnp.broadcast_to(
        jnp.arange(oh, dtype=jnp.float32)[:, None], (oh, ow))
    r = jnp.broadcast_to(
        jnp.arange(ow, dtype=jnp.float32)[None, :], (oh, ow))
    X = jnp.exp(r * max_r / ow) * jnp.cos(theta * 2.0 * jnp.pi / oh)
    Y = jnp.exp(r * max_r / ow) * jnp.sin(theta * 2.0 * jnp.pi / oh)
    return X, Y


def logpolar_geometry(input_shape, output_shape, smoothing=0, use_mask=True,
                      position="circumscribed", log_polar_distance=700.0):
    """Everything the forward pass needs that does not depend on data."""
    H, W = input_shape
    X, Y = compute_map(input_shape, output_shape, position, log_polar_distance)

    # default_center = (input_shape[0]/2, input_shape[1]/2)
    center_y, center_x = H / 2.0, W / 2.0
    X = center_x + X
    Y = center_y - Y

    # NOTE: intentionally mirrors the reference module's compute_mask, which
    # compares X against input_shape[0] (H) and Y against input_shape[1] (W)
    # (axes look swapped for non-square inputs; upstream behavior preserved).
    if use_mask:
        m = ((0.0 <= X) & (X < H) & (0.0 <= Y) & (Y < W)).astype(jnp.float32)
    else:
        m = jnp.ones_like(X)

    # .long() truncates toward zero, same as astype(int32) on floats.
    y_down = jnp.clip(Y.astype(jnp.int32), 0, H - 1)
    x_down = jnp.clip(X.astype(jnp.int32), 0, W - 1)
    y_up = jnp.clip(y_down + 1, 0, H - 1)
    x_up = jnp.clip(x_down + 1, 0, W - 1)

    if smoothing is None:
        # Nearest-neighbour path of the reference (no smoothing term).
        corners = ((y_down, x_down),)
        weights = (jnp.ones_like(X),)
        return m, corners, weights

    s = smoothing  # default 0 -> all four weights become 0.25 (0**0 == 1)
    dd = (Y - y_down) ** s + (X - x_down) ** s
    du = (Y - y_down) ** s + (X - x_up) ** s
    ud = (Y - y_up) ** s + (X - x_down) ** s
    uu = (Y - y_up) ** s + (X - x_up) ** s
    total = dd + du + ud + uu
    weights = (dd / total, du / total, ud / total, uu / total)
    corners = ((y_down, x_down), (y_down, x_up), (y_up, x_down), (y_up, x_up))
    return m, corners, weights


def build_gather_matrix(input_shape, output_shape, smoothing=0, use_mask=True,
                        position="circumscribed", log_polar_distance=700.0):
    """G[q, p] so that out[n, p] = sum_q data_flat[n, q] * G[q, p] (f32)."""
    H, W = input_shape
    oh, ow = output_shape
    m, corners, weights = logpolar_geometry(
        input_shape, output_shape, smoothing, use_mask, position,
        log_polar_distance)
    Q, P = H * W, oh * ow
    cols = jnp.arange(P)
    G = jnp.zeros((Q, P), jnp.float32)
    for (yy, xx), ww in zip(corners, weights):
        flat_idx = (yy * W + xx).reshape(-1)
        G = G.at[flat_idx, cols].add((ww * m).reshape(-1))
    return G


def _round_up(x, m):
    return -(-x // m) * m


def prepare_log_polar_operand(input_shape, output_shape, smoothing=0,
                              use_mask=True, position="circumscribed",
                              log_polar_distance=700.0,
                              tn=DEFAULT_TN, tk=DEFAULT_TK):
    """Build G once: cast (bf16 when bit-exact) and pre-pad to tile multiples.

    Hoisting the pad + cast here means the per-call forward path never
    re-streams the full QxP matrix through HBM just to pad it.
    """
    H, W = input_shape
    oh, ow = output_shape
    Q, P = H * W, oh * ow
    G = build_gather_matrix(input_shape, output_shape, smoothing, use_mask,
                            position, log_polar_distance)
    if smoothing == 0 or smoothing is None:
        # All entries are exact multiples of 0.25 in [0, 1] (incl. clipped
        # corner sums 0.5/0.75/1.0) -> bf16 is bit-exact and halves the
        # dominant HBM stream for G.  For smoothing != 0, G must stay f32.
        G = G.astype(jnp.bfloat16)
    tn = min(tn, _round_up(P, 128))
    tk = min(tk, _round_up(Q, 128))
    Qp, Pp = _round_up(Q, tk), _round_up(P, tn)
    Gp = jnp.pad(G, ((0, Qp - Q), (0, Pp - P)))
    meta = dict(output_shape=(oh, ow), Q=Q, P=P, tn=tn, tk=tk)
    return Gp, meta


# ---------------------------------------------------------------------------
# Pallas kernels: tiled matmul  (B*C, H*W) @ (H*W, out_h*out_w)
# The output tile doubles as the accumulator (same (i, j) block for every K
# step; K is the innermost "arbitrary" grid axis).
# ---------------------------------------------------------------------------
def _logpolar_mm_split_kernel(xhi_ref, xlo_ref, g_ref, o_ref):
    """2-pass f32 emulation: x = x_hi + x_lo (bf16), G is bf16-exact."""
    @pl.when(pl.program_id(2) == 0)
    def _():
        o_ref[...] = jnp.zeros_like(o_ref)

    g = g_ref[...]
    o_ref[...] += jnp.dot(xhi_ref[...], g, preferred_element_type=jnp.float32)
    o_ref[...] += jnp.dot(xlo_ref[...], g, preferred_element_type=jnp.float32)


def _logpolar_mm_bf16_kernel(x_ref, g_ref, o_ref):
    """Single-pass bf16 x bf16 (input already bf16)."""
    @pl.when(pl.program_id(2) == 0)
    def _():
        o_ref[...] = jnp.zeros_like(o_ref)

    o_ref[...] += jnp.dot(x_ref[...], g_ref[...],
                          preferred_element_type=jnp.float32)


def _logpolar_mm_f32_kernel(x_ref, g_ref, o_ref):
    """f32 path (smoothing != 0 -> G is not bf16-exact)."""
    @pl.when(pl.program_id(2) == 0)
    def _():
        o_ref[...] = jnp.zeros_like(o_ref)

    o_ref[...] += jnp.dot(x_ref[...], g_ref[...],
                          preferred_element_type=jnp.float32,
                          precision=jax.lax.Precision.HIGHEST)


def log_polar_forward(data, Gp, meta, *, tm=DEFAULT_TM):
    """data: (B, C, H, W).  Gp/meta: from prepare_log_polar_operand.

    Returns (B, C, out_h, out_w) float32.
    """
    B, C, H, W = data.shape
    oh, ow = meta["output_shape"]
    Q, P, tn, tk = meta["Q"], meta["P"], meta["tn"], meta["tk"]
    assert H * W == Q, "data spatial shape does not match prepared G"
    Qp, Pp = Gp.shape
    N = B * C
    x = data.reshape(N, Q)

    # G is the dominant HBM stream and is re-read Np/tm times: grow tm as far
    # as the (padded) batch allows.  Sublane-align to 16 (safe for bf16).
    tm = min(tm, _round_up(N, 16))
    Np = _round_up(N, tm)

    def pad(a):
        if a.shape == (Np, Qp):
            return a
        return jnp.pad(a, ((0, Np - N), (0, Qp - Q)))

    if Gp.dtype == jnp.bfloat16:
        if x.dtype == jnp.bfloat16:
            # Keep bf16 input as-is: single MXU pass, half the x HBM stream.
            kernel, xs, n_passes = _logpolar_mm_bf16_kernel, (pad(x),), 1
        else:
            # Manual 2-pass split of x only (G's bf16 "lo" part is zero, so
            # Precision.HIGH's third pass would be pure waste).
            xf = x.astype(jnp.float32)
            x_hi = xf.astype(jnp.bfloat16)
            x_lo = (xf - x_hi.astype(jnp.float32)).astype(jnp.bfloat16)
            kernel, xs, n_passes = (_logpolar_mm_split_kernel,
                                    (pad(x_hi), pad(x_lo)), 2)
    else:
        kernel, xs, n_passes = (_logpolar_mm_f32_kernel,
                                (pad(x.astype(jnp.float32)),), 3)

    grid = (Np // tm, Pp // tn, Qp // tk)  # K innermost (reduction axis last)
    x_spec = pl.BlockSpec((tm, tk), lambda i, j, k: (i, k))
    in_specs = [x_spec] * len(xs) + [pl.BlockSpec((tk, tn),
                                                  lambda i, j, k: (k, j))]

    g_bytes = Gp.size * Gp.dtype.itemsize
    x_bytes = sum(int(a.size) * a.dtype.itemsize for a in xs)
    out_bytes = Np * Pp * 4
    cost = pl.CostEstimate(
        flops=2 * Np * Qp * Pp * n_passes,
        transcendentals=0,
        bytes_accessed=x_bytes * (Pp // tn) + g_bytes * (Np // tm) + out_bytes)

    out_flat = pl.pallas_call(
        kernel,
        out_shape=jax.ShapeDtypeStruct((Np, Pp), jnp.float32),
        grid_spec=pltpu.PrefetchScalarGridSpec(
            num_scalar_prefetch=0,
            grid=grid,
            in_specs=in_specs,
            out_specs=pl.BlockSpec((tm, tn), lambda i, j, k: (i, j)),
        ),
        compiler_params=pltpu.CompilerParams(
            dimension_semantics=("parallel", "parallel", "arbitrary"),
            # ~12-16 MiB double-buffered at the default tiles; raise the
            # scoped limit above v5e's 16 MiB default, stay well under v7x's
            # 64 MiB physical VMEM.
            vmem_limit_bytes=32 * 1024 * 1024),
        cost_estimate=cost,
    )(*xs, Gp)

    return out_flat[:N, :P].reshape(B, C, oh, ow)


# ---------------------------------------------------------------------------
# Pure-JAX reference (direct translation of LogPolar.forward, smoothing path)
# ---------------------------------------------------------------------------
def log_polar_reference(data, input_shape, output_shape, smoothing=0,
                        use_mask=True):
    m, corners, weights = logpolar_geometry(
        input_shape, output_shape, smoothing, use_mask)
    out = jnp.zeros(data.shape[:-2] + output_shape, jnp.float32)
    for (yy, xx), ww in zip(corners, weights):
        out = out + ww * data[..., yy, xx]
    return m * out


# ---------------------------------------------------------------------------
if __name__ == "__main__":
    B, C, H, W = 2, 4, 16, 16
    input_shape = (H, W)
    output_shape = (16, 16)
    smoothing = 0  # module default; the GaussianBlur in the reference is unused

    key = jax.random.PRNGKey(0)
    data = jax.random.normal(key, (B, C, H, W), dtype=jnp.float32)

    Gp, meta = prepare_log_polar_operand(input_shape, output_shape,
                                         smoothing=smoothing, use_mask=True)

    out = log_polar_forward(data, Gp, meta)
    out = jax.block_until_ready(out)

    ref = log_polar_reference(data, input_shape, output_shape,
                              smoothing=smoothing, use_mask=True)
    np.testing.assert_allclose(np.asarray(out), np.asarray(ref),
                               rtol=1e-4, atol=1e-4)
    assert out.shape == (B, C) + output_shape
    print("KERNEL_OK")
</pallas_src>

<mosaic_0001>
module attributes {stable_mosaic.version = 11 : i64} {
  func.func @_logpolar_mm_split_kernel(%arg0: i32, %arg1: i32, %arg2: i32, %arg3: memref<16x256xbf16, #tpu.memory_space<vmem>>, %arg4: memref<16x256xbf16, #tpu.memory_space<vmem>>, %arg5: memref<256x256xbf16, #tpu.memory_space<vmem>>, %arg6: memref<16x256xf32, #tpu.memory_space<vmem>>) attributes {dimension_semantics = [#tpu.dimension_semantics<parallel>, #tpu.dimension_semantics<parallel>, #tpu.dimension_semantics<arbitrary>], iteration_bounds = array<i64: 1, 1, 1>, scalar_prefetch = 0 : i64, scratch_operands = 0 : i64, tpu.core_type = #tpu.core_type<tc>, window_params = [{transform_indices = @transform_0, window_bounds = array<i64: 16, 256>}, {transform_indices = @transform_1, window_bounds = array<i64: 16, 256>}, {transform_indices = @transform_2, window_bounds = array<i64: 256, 256>}, {transform_indices = @transform_3, window_bounds = array<i64: 16, 256>}]} {
    %c0_i32 = arith.constant 0 : i32
    %0 = arith.cmpi eq, %arg2, %c0_i32 : i32
    %1 = arith.extui %0 : i1 to i32
    %c0_i32_0 = arith.constant 0 : i32
    %2 = arith.cmpi ne, %1, %c0_i32_0 : i32
    scf.if %2 {
      %cst_15 = arith.constant 0.000000e+00 : f32
      %14 = vector.broadcast %cst_15 : f32 to vector<16x256xf32>
      %c0_16 = arith.constant 0 : index
      %c0_17 = arith.constant 0 : index
      %15 = vector.load %arg6[%c0_16, %c0_17] : memref<16x256xf32, #tpu.memory_space<vmem>>, vector<16x256xf32>
      tpu.vector_store %arg6[%c0_16, %c0_17], %14 {strides = array<i32>} : memref<16x256xf32, #tpu.memory_space<vmem>>, vector<16x256xf32>,
    } else {
    }
    %c0 = arith.constant 0 : index
    %c0_1 = arith.constant 0 : index
    %3 = vector.load %arg5[%c0, %c0_1] : memref<256x256xbf16, #tpu.memory_space<vmem>>, vector<256x256xbf16>
    %c0_2 = arith.constant 0 : index
    %c0_3 = arith.constant 0 : index
    %4 = vector.load %arg6[%c0_2, %c0_3] : memref<16x256xf32, #tpu.memory_space<vmem>>, vector<16x256xf32>
    %c0_4 = arith.constant 0 : index
    %c0_5 = arith.constant 0 : index
    %5 = vector.load %arg3[%c0_4, %c0_5] : memref<16x256xbf16, #tpu.memory_space<vmem>>, vector<16x256xbf16>
    %cst = arith.constant dense<0.000000e+00> : vector<16x256xf32>
    %6 = tpu.matmul %5, %3, %cst {dimension_numbers = #tpu.dot_dimension_numbers<[1], [0], [0], [1], [0, 0, 1, 1], [], []>} : vector<16x256xbf16>, vector<256x256xbf16>, vector<16x256xf32> -> vector<16x256xf32>
    %7 = arith.addf %4, %6 : vector<16x256xf32>
    %c0_6 = arith.constant 0 : index
    %c0_7 = arith.constant 0 : index
    %8 = vector.load %arg6[%c0_6, %c0_7] : memref<16x256xf32, #tpu.memory_space<vmem>>, vector<16x256xf32>
    tpu.vector_store %arg6[%c0_6, %c0_7], %7 {strides = array<i32>} : memref<16x256xf32, #tpu.memory_space<vmem>>, vector<16x256xf32>,
    %c0_8 = arith.constant 0 : index
    %c0_9 = arith.constant 0 : index
    %9 = vector.load %arg6[%c0_8, %c0_9] : memref<16x256xf32, #tpu.memory_space<vmem>>, vector<16x256xf32>
    %c0_10 = arith.constant 0 : index
    %c0_11 = arith.constant 0 : index
    %10 = vector.load %arg4[%c0_10, %c0_11] : memref<16x256xbf16, #tpu.memory_space<vmem>>, vector<16x256xbf16>
    %cst_12 = arith.constant dense<0.000000e+00> : vector<16x256xf32>
    %11 = tpu.matmul %10, %3, %cst_12 {dimension_numbers = #tpu.dot_dimension_numbers<[1], [0], [0], [1], [0, 0, 1, 1], [], []>} : vector<16x256xbf16>, vector<256x256xbf16>, vector<16x256xf32> -> vector<16x256xf32>
    %12 = arith.addf %9, %11 : vector<16x256xf32>
    %c0_13 = arith.constant 0 : index
    %c0_14 = arith.constant 0 : index
    %13 = vector.load %arg6[%c0_13, %c0_14] : memref<16x256xf32, #tpu.memory_space<vmem>>, vector<16x256xf32>
    tpu.vector_store %arg6[%c0_13, %c0_14], %12 {strides = array<i32>} : memref<16x256xf32, #tpu.memory_space<vmem>>, vector<16x256xf32>,
    return
  }
  func.func @transform_0(%arg0: i32, %arg1: i32, %arg2: i32) -> (i32, i32) {
    %c0_i32 = arith.constant 0 : i32
    return %arg0, %arg2 : i32, i32
  }
  func.func @transform_1(%arg0: i32, %arg1: i32, %arg2: i32) -> (i32, i32) {
    %c0_i32 = arith.constant 0 : i32
    return %arg0, %arg2 : i32, i32
  }
  func.func @transform_2(%arg0: i32, %arg1: i32, %arg2: i32) -> (i32, i32) {
    %c0_i32 = arith.constant 0 : i32
    return %arg2, %arg1 : i32, i32
  }
  func.func @transform_3(%arg0: i32, %arg1: i32, %arg2: i32) -> (i32, i32) {
    %c0_i32 = arith.constant 0 : i32
    return %arg0, %arg1 : i32, i32
  }
}

</mosaic_0001>

<llo_original>
// kernel: tpu_custom_call.1
$region0: #{tpu_custom_call.1}
  #allocation0 [shape = 'u32[]', space=smem, size = 0x4, offset = 0x4, fixed_abs, tag = 'smem constant byte address 0x4 - core index']
  #allocation1 [shape = 'u32[144,128]{1,0:T(1,128)}', space=vmem, size = 0x12000, scoped, tag = 'internal scratch']
  %s0 = inlined_call_operand.hbm [shape: bf16[16,256], index: 0, kind: input, shape index: {}]
  %s1 = inlined_call_operand.hbm [shape: bf16[16,256], index: 1, kind: input, shape index: {}]
  %s2 = inlined_call_operand.hbm [shape: bf16[256,256], index: 2, kind: input, shape index: {}]
  %s3 = inlined_call_operand.hbm [shape: f32[16,256], index: 3, kind: output, shape index: {}]
  %s4 = sld [smem:[#allocation0]]
  $region38: #{tpu_custom_call.1} parent=0
    _
  %s6 = ssub.s32 1, %s4
  %s7 = scalar_select 0, %s6, %s4
  $region1: #{tpu_custom_call.1} parent=0
    #allocation2 [shape = 'u8[8192]{0}', space=vmem, size = 0x2000, scoped, tag = 'input window, operand 0, single buffered']
    #allocation3 [shape = 's32[1]{0}', space=sflag, size = 0x4, scoped, tag = 'scoped memory for tpu_custom_call.1']
    #allocation4 [shape = 's32[1]{0}', space=sflag, size = 0x4, scoped, tag = 'scoped memory for tpu_custom_call.1']
    #allocation5 [shape = 'u8[8192]{0}', space=vmem, size = 0x2000, scoped, tag = 'input window, operand 1, single buffered']
    #allocation6 [shape = 's32[1]{0}', space=sflag, size = 0x4, scoped, tag = 'scoped memory for tpu_custom_call.1']
    #allocation7 [shape = 'u8[131072]{0}', space=vmem, size = 0x20000, scoped, tag = 'input window, operand 2, single buffered']
    #allocation8 [shape = 'u8[16384]{0}', space=vmem, size = 0x4000, scoped, tag = 'output window, operand 0, single buffered']
    %8 = vsyncpa [#allocation3], 0
    %9 = vsyncpa [#allocation6], 0
    %10 = vsyncpa [#allocation4], 0
    // Predicated region
    $region2: #{tpu_custom_call.1} parent=1 // pred_check
      _
    $region3: #{tpu_custom_call.1} parent=1 // pred_check_branch
      %12 = sbr.rel (0) target = $region5
    $region4: #{tpu_custom_call.1} parent=1 // pred_region
      %s14 = ssub.s32 256, 256
      %15 = vsyncadd [#allocation3], %s14
      %s16 = sshll.u32 [#allocation2], 4
      %s17 = int_to_ptr.vmem [resolvable:$true] %s16
      %22 = dma.hbm_to_vmem [thread:$0]  %s0, 256, %s17, [#allocation3], 128, 128, 8
    $region5: #{tpu_custom_call.1} parent=1 // pred_fallthru
      _
    // Predicated region
    $region6: #{tpu_custom_call.1} parent=1 // pred_check
      _
    $region7: #{tpu_custom_call.1} parent=1 // pred_check_branch
      %24 = sbr.rel (0) target = $region9
    $region8: #{tpu_custom_call.1} parent=1 // pred_region
      %s26 = ssub.s32 256, 256
      %27 = vsyncadd [#allocation6], %s26
      %s28 = sshll.u32 [#allocation5], 4
      %s29 = int_to_ptr.vmem [resolvable:$true] %s28
      %34 = dma.hbm_to_vmem [thread:$0]  %s1, 256, %s29, [#allocation6], 128, 128, 8
    $region9: #{tpu_custom_call.1} parent=1 // pred_fallthru
      _
    // Predicated region
    $region10: #{tpu_custom_call.1} parent=1 // pred_check
      _
    $region11: #{tpu_custom_call.1} parent=1 // pred_check_branch
      %36 = sbr.rel (0) target = $region13
    $region12: #{tpu_custom_call.1} parent=1 // pred_region
      %s38 = ssub.s32 4096, 4096
      %39 = vsyncadd [#allocation6], %s38
      %s40 = sshll.u32 [#allocation7], 4
      %s41 = int_to_ptr.vmem [resolvable:$true] %s40
      %46 = dma.hbm_to_vmem [thread:$0]  %s2, 4096, %s41, [#allocation6], 128, 128, 8
    $region13: #{tpu_custom_call.1} parent=1 // pred_fallthru
      _
    // Predicated region
    $region14: #{tpu_custom_call.1} parent=1 // pred_check
      _
    $region15: #{tpu_custom_call.1} parent=1 // pred_check_branch
      %48 = sbr.rel (0) target = $region17
    $region16: #{tpu_custom_call.1} parent=1 // pred_region
      %49 = dma.done [#allocation3], 256
    $region17: #{tpu_custom_call.1} parent=1 // pred_fallthru
      _
    // Predicated region
    $region18: #{tpu_custom_call.1} parent=1 // pred_check
      _
    $region19: #{tpu_custom_call.1} parent=1 // pred_check_branch
      %51 = sbr.rel (0) target = $region21
    $region20: #{tpu_custom_call.1} parent=1 // pred_region
      %52 = dma.done [#allocation6], 256
    $region21: #{tpu_custom_call.1} parent=1 // pred_fallthru
      _
    // Predicated region
    $region22: #{tpu_custom_call.1} parent=1 // pred_check
      _
    $region23: #{tpu_custom_call.1} parent=1 // pred_check_branch
      %54 = sbr.rel (0) target = $region25
    $region24: #{tpu_custom_call.1} parent=1 // pred_region
      %55 = dma.done [#allocation6], 4096
    $region25: #{tpu_custom_call.1} parent=1 // pred_fallthru
      _
    %p56 = scmp.eq.s32.totalorder 0, 0
    // Predicated region
    $region26: #{tpu_custom_call.1} parent=1 // pred_check
      %p57 = pneg %p56
    $region27: #{tpu_custom_call.1} parent=1 // pred_check_branch
      %59 = sbr.rel (%p57) target = $region29
    $region28: #{tpu_custom_call.1} parent=1 // pred_region
      %60 = vst [vmem:[#allocation8] sm:$0xff] 0.0
      %61 = vst [vmem:[#allocation8 + $0x8] sm:$0xff] 0.0
      %62 = vst [vmem:[#allocation8 + $0x10] sm:$0xff] 0.0
      %63 = vst [vmem:[#allocation8 + $0x18] sm:$0xff] 0.0
    $region29: #{tpu_custom_call.1} parent=1 // pred_fallthru
      _
    %v64 = vld [vmem:[#allocation7] sm:$0xff]
    %v65 = vld [vmem:[#allocation7 + $0x8] sm:$0xff]
    %v66 = vld [vmem:[#allocation7 + $0x10] sm:$0xff]
    %v67 = vld [vmem:[#allocation7 + $0x18] sm:$0xff]
    %v68 = vld [vmem:[#allocation7 + $0x20] sm:$0xff]
    %v69 = vld [vmem:[#allocation7 + $0x28] sm:$0xff]
    %v70 = vld [vmem:[#allocation7 + $0x30] sm:$0xff]
    %v71 = vld [vmem:[#allocation7 + $0x38] sm:$0xff]
    %v72 = vld [vmem:[#allocation7 + $0x40] sm:$0xff]
    %v73 = vld [vmem:[#allocation7 + $0x48] sm:$0xff]
    %v74 = vld [vmem:[#allocation7 + $0x50] sm:$0xff]
    %v75 = vld [vmem:[#allocation7 + $0x58] sm:$0xff]
    %v76 = vld [vmem:[#allocation7 + $0x60] sm:$0xff]
    %v77 = vld [vmem:[#allocation7 + $0x68] sm:$0xff]
    %v78 = vld [vmem:[#allocation7 + $0x70] sm:$0xff]
    %v79 = vld [vmem:[#allocation7 + $0x78] sm:$0xff]
    %v80 = vld [vmem:[#allocation7 + $0x80] sm:$0xff]
    %v81 = vld [vmem:[#allocation7 + $0x88] sm:$0xff]
    %v82 = vld [vmem:[#allocation7 + $0x90] sm:$0xff]
    %v83 = vld [vmem:[#allocation7 + $0x98] sm:$0xff]
    %v84 = vld [vmem:[#allocation7 + $0xa0] sm:$0xff]
    %v85 = vld [vmem:[#allocation7 + $0xa8] sm:$0xff]
    %v86 = vld [vmem:[#allocation7 + $0xb0] sm:$0xff]
    %v87 = vld [vmem:[#allocation7 + $0xb8] sm:$0xff]
    %v88 = vld [vmem:[#allocation7 + $0xc0] sm:$0xff]
    %v89 = vld [vmem:[#allocation7 + $0xc8] sm:$0xff]
    %v90 = vld [vmem:[#allocation7 + $0xd0] sm:$0xff]
    %v91 = vld [vmem:[#allocation7 + $0xd8] sm:$0xff]
    %v92 = vld [vmem:[#allocation7 + $0xe0] sm:$0xff]
    %v93 = vld [vmem:[#allocation7 + $0xe8] sm:$0xff]
    %v94 = vld [vmem:[#allocation7 + $0xf0] sm:$0xff]
    %v95 = vld [vmem:[#allocation7 + $0xf8] sm:$0xff]
    %v96 = vld [vmem:[#allocation8] sm:$0xff]
    %v97 = vld [vmem:[#allocation8 + $0x8] sm:$0xff]
    %v98 = vld [vmem:[#allocation8 + $0x10] sm:$0xff]
    %v99 = vld [vmem:[#allocation8 + $0x18] sm:$0xff]
    %v100 = vld [vmem:[#allocation2] sm:$0xff]
    %v101 = vld [vmem:[#allocation2 + $0x8] sm:$0xff]
    %v104 = vunpack.c.l.b16 %v100
    %v105 = vunpack.c.h.b16 %v100
    %v106 = vunpack.c.l.b16 %v101
    %v107 = vunpack.c.h.b16 %v101
    %v108 = vpack.c.b16 %v106, %v104
    %v109 = vpack.c.b16 %v107, %v105
    %v144 = vunpack.c.l.b16 %v64
    %v145 = vunpack.c.h.b16 %v64
    %v146 = vunpack.c.l.b16 %v65
    %v147 = vunpack.c.h.b16 %v65
    %v148 = vunpack.c.l.b16 %v66
    %v149 = vunpack.c.h.b16 %v66
    %v150 = vunpack.c.l.b16 %v67
    %v151 = vunpack.c.h.b16 %v67
    %v152 = vunpack.c.l.b16 %v68
    %v153 = vunpack.c.h.b16 %v68
    %v154 = vunpack.c.l.b16 %v69
    %v155 = vunpack.c.h.b16 %v69
    %v156 = vunpack.c.l.b16 %v70
    %v157 = vunpack.c.h.b16 %v70
    %v158 = vunpack.c.l.b16 %v71
    %v159 = vunpack.c.h.b16 %v71
    %v160 = vunpack.c.l.b16 %v72
    %v161 = vunpack.c.h.b16 %v72
    %v162 = vunpack.c.l.b16 %v73
    %v163 = vunpack.c.h.b16 %v73
    %v164 = vunpack.c.l.b16 %v74
    %v165 = vunpack.c.h.b16 %v74
    %v166 = vunpack.c.l.b16 %v75
    %v167 = vunpack.c.h.b16 %v75
    %v168 = vunpack.c.l.b16 %v76
    %v169 = vunpack.c.h.b16 %v76
    %v170 = vunpack.c.l.b16 %v77
    %v171 = vunpack.c.h.b16 %v77
    %v172 = vunpack.c.l.b16 %v78
    %v173 = vunpack.c.h.b16 %v78
    %v174 = vunpack.c.l.b16 %v79
    %v175 = vunpack.c.h.b16 %v79
    %v176 = vunpack.c.l.b16 %v80
    %v177 = vunpack.c.h.b16 %v80
    %v178 = vunpack.c.l.b16 %v81
    %v179 = vunpack.c.h.b16 %v81
    %v180 = vunpack.c.l.b16 %v82
    %v181 = vunpack.c.h.b16 %v82
    %v182 = vunpack.c.l.b16 %v83
    %v183 = vunpack.c.h.b16 %v83
    %v184 = vunpack.c.l.b16 %v84
    %v185 = vunpack.c.h.b16 %v84
    %v186 = vunpack.c.l.b16 %v85
    %v187 = vunpack.c.h.b16 %v85
    %v188 = vunpack.c.l.b16 %v86
    %v189 = vunpack.c.h.b16 %v86
    %v190 = vunpack.c.l.b16 %v87
    %v191 = vunpack.c.h.b16 %v87
    %v192 = vunpack.c.l.b16 %v88
    %v193 = vunpack.c.h.b16 %v88
    %v194 = vunpack.c.l.b16 %v89
    %v195 = vunpack.c.h.b16 %v89
    %v196 = vunpack.c.l.b16 %v90
    %v197 = vunpack.c.h.b16 %v90
    %v198 = vunpack.c.l.b16 %v91
    %v199 = vunpack.c.h.b16 %v91
    %v200 = vunpack.c.l.b16 %v92
    %v201 = vunpack.c.h.b16 %v92
    %v202 = vunpack.c.l.b16 %v93
    %v203 = vunpack.c.h.b16 %v93
    %v204 = vunpack.c.l.b16 %v94
    %v205 = vunpack.c.h.b16 %v94
    %v206 = vunpack.c.l.b16 %v95
    %v207 = vunpack.c.h.b16 %v95
    %v208 = vpack.c.b16 %v146, %v144
    %v209 = vpack.c.b16 %v147, %v145
    %v210 = vpack.c.b16 %v150, %v148
    %v211 = vpack.c.b16 %v151, %v149
    %v212 = vpack.c.b16 %v154, %v152
    %v213 = vpack.c.b16 %v155, %v153
    %v214 = vpack.c.b16 %v158, %v156
    %v215 = vpack.c.b16 %v159, %v157
    %v216 = vpack.c.b16 %v162, %v160
    %v217 = vpack.c.b16 %v163, %v161
    %v218 = vpack.c.b16 %v166, %v164
    %v219 = vpack.c.b16 %v167, %v165
    %v220 = vpack.c.b16 %v170, %v168
    %v221 = vpack.c.b16 %v171, %v169
    %v222 = vpack.c.b16 %v174, %v172
    %v223 = vpack.c.b16 %v175, %v173
    %v224 = vpack.c.b16 %v178, %v176
    %v225 = vpack.c.b16 %v179, %v177
    %v226 = vpack.c.b16 %v182, %v180
    %v227 = vpack.c.b16 %v183, %v181
    %v228 = vpack.c.b16 %v186, %v184
    %v229 = vpack.c.b16 %v187, %v185
    %v230 = vpack.c.b16 %v190, %v188
    %v231 = vpack.c.b16 %v191, %v189
    %v232 = vpack.c.b16 %v194, %v192
    %v233 = vpack.c.b16 %v195, %v193
    %v234 = vpack.c.b16 %v198, %v196
    %v235 = vpack.c.b16 %v199, %v197
    %v236 = vpack.c.b16 %v202, %v200
    %v237 = vpack.c.b16 %v203, %v201
    %v238 = vpack.c.b16 %v206, %v204
    %v239 = vpack.c.b16 %v207, %v205
    %272 = vmatprep.subr.bf16.mxu0 %v223
    %273 = vmatpush1.bf16.msra.mxu0 %v222
    %274 = vmatprep.subr.bf16.mxu0 %v221
    %275 = vmatpush1.bf16.msra.mxu0 %v220
    %276 = vmatprep.subr.bf16.mxu0 %v219
    %277 = vmatpush1.bf16.msra.mxu0 %v218
    %278 = vmatprep.subr.bf16.mxu0 %v217
    %279 = vmatpush1.bf16.msra.mxu0 %v216
    %280 = vmatprep.subr.bf16.mxu0 %v215
    %281 = vmatpush1.bf16.msra.mxu0 %v214
    %282 = vmatprep.subr.bf16.mxu0 %v213
    %283 = vmatpush1.bf16.msra.mxu0 %v212
    %284 = vmatprep.subr.bf16.mxu0 %v211
    %285 = vmatpush1.bf16.msra.mxu0 %v210
    %286 = vmatprep.subr.bf16.mxu0 %v209
    %287 = vmatpush1.bf16.msra.mxu0 %v208
    %288 = vmatprep.subr.bf16.mxu0 %v239
    %289 = vmatpush2.bf16.msra.mxu0 %v238
    %290 = vmatprep.subr.bf16.mxu0 %v237
    %291 = vmatpush2.bf16.msra.mxu0 %v236
    %292 = vmatprep.subr.bf16.mxu0 %v235
    %293 = vmatpush2.bf16.msra.mxu0 %v234
    %294 = vmatprep.subr.bf16.mxu0 %v233
    %295 = vmatpush2.bf16.msra.mxu0 %v232
    %296 = vmatprep.subr.bf16.mxu0 %v231
    %297 = vmatpush2.bf16.msra.mxu0 %v230
    %298 = vmatprep.subr.bf16.mxu0 %v229
    %299 = vmatpush2.bf16.msra.mxu0 %v228
    %300 = vmatprep.subr.bf16.mxu0 %v227
    %301 = vmatpush2.bf16.msra.mxu0 %v226
    %302 = vmatprep.subr.bf16.mxu0 %v225
    %303 = vmatpush2.bf16.msra.mxu0 %v224
    %304 = vmatprep.mubr.bf16.mxu0 %v109
    %305 = vmatmul.mubr.bf16.gmra.mxu0 %v108
    %v306 = vpop.f32.mrf.mxu0
    %v307 = vadd.f32 0.0, %v306
    %v308 = vpop.f32.mrf.mxu0
    %v309 = vadd.f32 0.0, %v308
    %v310 = vpop.f32.mrf.mxu0
    %v311 = vadd.f32 0.0, %v310
    %v312 = vpop.f32.mrf.mxu0
    %v313 = vadd.f32 0.0, %v312
    %314 = vdwg.mxu0
    %v315 = vadd.f32 %v96, %v307
    %v316 = vadd.f32 %v97, %v309
    %v317 = vadd.f32 %v98, %v311
    %v318 = vadd.f32 %v99, %v313
    %319 = vst [vmem:[#allocation8] sm:$0xff] %v315
    %320 = vst [vmem:[#allocation8 + $0x8] sm:$0xff] %v316
    %321 = vst [vmem:[#allocation8 + $0x10] sm:$0xff] %v317
    %322 = vst [vmem:[#allocation8 + $0x18] sm:$0xff] %v318
    %v323 = vld [vmem:[#allocation8] sm:$0xff]
    %v324 = vld [vmem:[#allocation8 + $0x8] sm:$0xff]
    %v325 = vld [vmem:[#allocation8 + $0x10] sm:$0xff]
    %v326 = vld [vmem:[#allocation8 + $0x18] sm:$0xff]
    %v327 = vld [vmem:[#allocation5] sm:$0xff]
    %v328 = vld [vmem:[#allocation5 + $0x8] sm:$0xff]
    %v331 = vunpack.c.l.b16 %v327
    %v332 = vunpack.c.h.b16 %v327
    %v333 = vunpack.c.l.b16 %v328
    %v334 = vunpack.c.h.b16 %v328
    %v335 = vpack.c.b16 %v333, %v331
    %v336 = vpack.c.b16 %v334, %v332
    %339 = vmatprep.subr.bf16.mxu0 %v223
    %340 = vmatpush1.bf16.msra.mxu0 %v222
    %341 = vmatprep.subr.bf16.mxu0 %v221
    %342 = vmatpush1.bf16.msra.mxu0 %v220
    %343 = vmatprep.subr.bf16.mxu0 %v219
    %344 = vmatpush1.bf16.msra.mxu0 %v218
    %345 = vmatprep.subr.bf16.mxu0 %v217
    %346 = vmatpush1.bf16.msra.mxu0 %v216
    %347 = vmatprep.subr.bf16.mxu0 %v215
    %348 = vmatpush1.bf16.msra.mxu0 %v214
    %349 = vmatprep.subr.bf16.mxu0 %v213
    %350 = vmatpush1.bf16.msra.mxu0 %v212
    %351 = vmatprep.subr.bf16.mxu0 %v211
    %352 = vmatpush1.bf16.msra.mxu0 %v210
    %353 = vmatprep.subr.bf16.mxu0 %v209
    %354 = vmatpush1.bf16.msra.mxu0 %v208
    %355 = vmatprep.subr.bf16.mxu0 %v239
    %356 = vmatpush2.bf16.msra.mxu0 %v238
    %357 = vmatprep.subr.bf16.mxu0 %v237
    %358 = vmatpush2.bf16.msra.mxu0 %v236
    %359 = vmatprep.subr.bf16.mxu0 %v235
    %360 = vmatpush2.bf16.msra.mxu0 %v234
    %361 = vmatprep.subr.bf16.mxu0 %v233
    %362 = vmatpush2.bf16.msra.mxu0 %v232
    %363 = vmatprep.subr.bf16.mxu0 %v231
    %364 = vmatpush2.bf16.msra.mxu0 %v230
    %365 = vmatprep.subr.bf16.mxu0 %v229
    %366 = vmatpush2.bf16.msra.mxu0 %v228
    %367 = vmatprep.subr.bf16.mxu0 %v227
    %368 = vmatpush2.bf16.msra.mxu0 %v226
    %369 = vmatprep.subr.bf16.mxu0 %v225
    %370 = vmatpush2.bf16.msra.mxu0 %v224
    %371 = vmatprep.mubr.bf16.mxu0 %v336
    %372 = vmatmul.mubr.bf16.gmra.mxu0 %v335
    %v373 = vpop.f32.mrf.mxu0
    %v374 = vadd.f32 0.0, %v373
    %v375 = vpop.f32.mrf.mxu0
    %v376 = vadd.f32 0.0, %v375
    %v377 = vpop.f32.mrf.mxu0
    %v378 = vadd.f32 0.0, %v377
    %v379 = vpop.f32.mrf.mxu0
    %v380 = vadd.f32 0.0, %v379
    %381 = vdwg.mxu0
    %v382 = vadd.f32 %v323, %v374
    %v383 = vadd.f32 %v324, %v376
    %v384 = vadd.f32 %v325, %v378
    %v385 = vadd.f32 %v326, %v380
    %386 = vst [vmem:[#allocation8] sm:$0xff] %v382
    %387 = vst [vmem:[#allocation8 + $0x8] sm:$0xff] %v383
    %388 = vst [vmem:[#allocation8 + $0x10] sm:$0xff] %v384
    %389 = vst [vmem:[#allocation8 + $0x18] sm:$0xff] %v385
    // Predicated region
    $region30: #{tpu_custom_call.1} parent=1 // pred_check
      _
    $region31: #{tpu_custom_call.1} parent=1 // pred_check_branch
      %391 = sbr.rel (0) target = $region33
    $region32: #{tpu_custom_call.1} parent=1 // pred_region
      %s393 = ssub.s32 512, 512
      %394 = vsyncadd [#allocation4], %s393
      %s395 = sshll.u32 [#allocation8], 4
      %s396 = int_to_ptr.vmem [resolvable:$true] %s395
      %401 = dma.vmem_to_hbm [thread:$0]  %s396, 512, %s3, [#allocation4], 256, 256, 16
    $region33: #{tpu_custom_call.1} parent=1 // pred_fallthru
      _
    // Predicated region
    $region34: #{tpu_custom_call.1} parent=1 // pred_check
      _
    $region35: #{tpu_custom_call.1} parent=1 // pred_check_branch
      %403 = sbr.rel (0) target = $region37
    $region36: #{tpu_custom_call.1} parent=1 // pred_region
      %404 = dma.done [#allocation4], 512
    $region37: #{tpu_custom_call.1} parent=1 // pred_fallthru
      _
    %405 = vsyncpa [#allocation3], 1
    %406 = vsyncpa [#allocation6], 1
    %407 = vsyncpa [#allocation4], 1

</llo_original>
